<compile_context>
chip_gen: v7x
topology: tpu7x:2x2x1
jax: 0.10.0
libtpu: 0.0.40
codegen_flags: <defaults>
</compile_context>

<pallas_src>
import jax
import jax.numpy as jnp
from jax.experimental import pallas as pl
from jax.experimental.pallas import tpu as pltpu

MAX_Z = 118  # as in graph_pes

_LANE = 128
# Double-buffered per-step VMEM budget; leaves headroom under v7x's 32 MiB
# scoped default (64 MiB physical) and is far under v5e/v6e's 128 MiB.
_VMEM_TILE_BUDGET = 24 * 1024 * 1024
_VMEM_LIMIT_BYTES = 32 * 1024 * 1024  # explicit so v5e's 16 MiB default never clamps


def _round_up(x: int, m: int) -> int:
    return ((x + m - 1) // m) * m


def _choose_tile(N: int, C: int, tile_n: int, out_itemsize: int) -> int:
    """C-aware atom tile: as large as possible, capped by the VMEM budget."""
    # Bytes per atom per grid step: Z in (4 B) + one-hot out (C * itemsize),
    # each double-buffered by the BlockSpec pipeline.
    per_atom = 2 * (4 + C * out_itemsize)
    max_tile = max(_LANE, (_VMEM_TILE_BUDGET // per_atom) // _LANE * _LANE)
    tile = min(tile_n, max_tile, _round_up(max(N, 1), _LANE))
    return max(_LANE, (tile // _LANE) * _LANE)


# ---------------------------------------------------------------------------
# Kernels: a single vectorized equality compare per tile.
# ---------------------------------------------------------------------------

def _one_hot_t_kernel(z_ref, elems_ref, out_ref):
    # z_ref:     (1, tile) int32   -- atoms on the lane axis (lane-dense)
    # elems_ref: (C, 1)    int32   -- classes on the sublane axis
    # out_ref:   (C, tile)         -- transposed one-hot tile
    out_ref[...] = (z_ref[...] == elems_ref[...]).astype(out_ref.dtype)


def _one_hot_kernel(z_ref, elems_ref, out_ref):
    # z_ref:     (tile, 1) int32   -- atoms on the sublane axis
    # elems_ref: (1, C)    int32   -- classes on the lane axis
    # out_ref:   (tile, C)         -- row-major one-hot tile (PyTorch layout)
    out_ref[...] = (z_ref[...] == elems_ref[...]).astype(out_ref.dtype)


# ---------------------------------------------------------------------------
# Wrappers
# ---------------------------------------------------------------------------

def z_to_one_hot_transposed(
    Z: jax.Array,
    elements: jax.Array,
    *,
    tile_n: int = 131072,
    out_dtype=jnp.int32,
    small_n_threshold: int = 1024,
) -> jax.Array:
    """Lane-dense transposed one-hot: returns (C, N).

    Z:        (N,) atomic numbers
    elements: (C,) supported atomic numbers (defines class order)
    """
    assert tile_n % _LANE == 0, "tile_n must be a multiple of 128 (lane width)"
    N = Z.shape[0]
    C = elements.shape[0]
    Z = Z.astype(jnp.int32)
    elements = elements.astype(jnp.int32)

    if N <= small_n_threshold:
        # At small N, pallas dispatch/fixed step overhead dominates; XLA's
        # fused elementwise compare is as fast or faster.
        return (elements[:, None] == Z[None, :]).astype(out_dtype)

    tile = _choose_tile(N, C, tile_n, jnp.dtype(out_dtype).itemsize)
    z_row = Z.reshape(1, N)              # atoms lane-dense
    elems_col = elements.reshape(C, 1)   # classes on sublanes

    return pl.pallas_call(
        _one_hot_t_kernel,
        out_shape=jax.ShapeDtypeStruct((C, N), out_dtype),
        grid_spec=pltpu.PrefetchScalarGridSpec(
            num_scalar_prefetch=0,
            grid=(pl.cdiv(N, tile),),
            in_specs=[
                pl.BlockSpec((1, tile), lambda i: (0, i)),   # Z tile
                pl.BlockSpec((C, 1), lambda i: (0, 0)),      # full element list
            ],
            out_specs=pl.BlockSpec((C, tile), lambda i: (0, i)),
        ),
        compiler_params=pltpu.CompilerParams(
            dimension_semantics=("parallel",),
            vmem_limit_bytes=_VMEM_LIMIT_BYTES,
        ),
    )(z_row, elems_col)


def z_to_one_hot(
    Z: jax.Array,
    elements: jax.Array,
    *,
    tile_n: int = 131072,
    out_dtype=jnp.int32,
    small_n_threshold: int = 1024,
) -> jax.Array:
    """Pallas implementation of ZToOneHot.forward: returns (N, C) one-hot.

    Single-pass (N, C) layout (no extra transpose pass over HBM). For a
    consumer that can take the lane-dense (C, N) layout, prefer
    `z_to_one_hot_transposed`.
    """
    assert tile_n % _LANE == 0, "tile_n must be a multiple of 128 (lane width)"
    N = Z.shape[0]
    C = elements.shape[0]
    Z = Z.astype(jnp.int32)
    elements = elements.astype(jnp.int32)

    if N <= small_n_threshold:
        return (Z[:, None] == elements[None, :]).astype(out_dtype)

    tile = _choose_tile(N, C, tile_n, jnp.dtype(out_dtype).itemsize)
    z_col = Z.reshape(N, 1)              # atoms on sublanes
    elems_row = elements.reshape(1, C)   # classes on lanes

    return pl.pallas_call(
        _one_hot_kernel,
        out_shape=jax.ShapeDtypeStruct((N, C), out_dtype),
        grid_spec=pltpu.PrefetchScalarGridSpec(
            num_scalar_prefetch=0,
            grid=(pl.cdiv(N, tile),),
            in_specs=[
                pl.BlockSpec((tile, 1), lambda i: (i, 0)),   # Z tile
                pl.BlockSpec((1, C), lambda i: (0, 0)),      # full element list
            ],
            out_specs=pl.BlockSpec((tile, C), lambda i: (i, 0)),
        ),
        compiler_params=pltpu.CompilerParams(
            dimension_semantics=("parallel",),
            vmem_limit_bytes=_VMEM_LIMIT_BYTES,
        ),
    )(z_col, elems_row)


def build_z_to_index(elements: list[int]) -> jnp.ndarray:
    """Deterministic equivalent of the registered buffer (reference checking
    only; the kernel fuses lookup + one_hot)."""
    table = jnp.full((MAX_Z + 1,), -1, dtype=jnp.int32)
    for i, z in enumerate(elements):
        table = table.at[z].set(i)
    return table


if __name__ == "__main__":
    # Supported elements: H, C, N, O, Cu  ->  num_classes = 5
    elements = jnp.array([1, 6, 7, 8, 29], dtype=jnp.int32)
    C = int(elements.shape[0])

    # Deterministic synthetic atomic numbers drawn from the supported set.
    key = jax.random.PRNGKey(0)
    n_atoms = 300  # deliberately not a multiple of the tile size
    idx = jax.random.randint(key, (n_atoms,), 0, C)
    Z = elements[idx].astype(jnp.int32)

    # Reference (mirrors the PyTorch two-step forward).
    table = build_z_to_index([int(z) for z in elements])
    ref = jax.nn.one_hot(table[Z], C, dtype=jnp.int32)

    # 1) (N, C) Pallas path with a small tile so the grid has multiple steps
    #    and a partial boundary block (small_n_threshold=0 forces the kernel).
    out = z_to_one_hot(Z, elements, tile_n=128, small_n_threshold=0)
    out = jax.block_until_ready(out)
    assert out.shape == (n_atoms, C) and out.dtype == jnp.int32
    assert bool(jnp.all(out == ref))

    # 2) Same with the default (large) tile: single, boundary-masked block.
    out_big = jax.block_until_ready(
        z_to_one_hot(Z, elements, small_n_threshold=0)
    )
    assert bool(jnp.all(out_big == ref))

    # 3) Lane-dense transposed (C, N) Pallas path, multi-step grid.
    out_t = jax.block_until_ready(
        z_to_one_hot_transposed(Z, elements, tile_n=128, small_n_threshold=0)
    )
    assert out_t.shape == (C, n_atoms)
    assert bool(jnp.all(out_t == ref.T))

    # 4) Narrow output dtype (int8) on the transposed kernel.
    out_t8 = jax.block_until_ready(
        z_to_one_hot_transposed(
            Z, elements, tile_n=128, out_dtype=jnp.int8, small_n_threshold=0
        )
    )
    assert out_t8.dtype == jnp.int8
    assert bool(jnp.all(out_t8.astype(jnp.int32) == ref.T))

    # 5) Small-N fast path (plain jnp) agrees with the kernel output.
    out_fast = jax.block_until_ready(z_to_one_hot(Z, elements))  # N < threshold
    assert bool(jnp.all(out_fast == ref))

    print("KERNEL_OK")
</pallas_src>

<mosaic_0001>
module attributes {stable_mosaic.version = 11 : i64} {
  func.func @_one_hot_kernel(%arg0: i32, %arg1: memref<128x1xi32, #tpu.memory_space<vmem>>, %arg2: memref<1x5xi32, #tpu.memory_space<vmem>>, %arg3: memref<128x5xi32, #tpu.memory_space<vmem>>) attributes {dimension_semantics = [#tpu.dimension_semantics<parallel>], iteration_bounds = array<i64: 3>, scalar_prefetch = 0 : i64, scratch_operands = 0 : i64, tpu.core_type = #tpu.core_type<tc>, window_params = [{transform_indices = @transform_0, window_bounds = array<i64: 128, 1>}, {pipeline_mode = #tpu.pipeline_mode<synchronous>, transform_indices = @transform_1, window_bounds = array<i64: 1, 5>}, {transform_indices = @transform_2, window_bounds = array<i64: 128, 5>}]} {
    %c0 = arith.constant 0 : index
    %c0_0 = arith.constant 0 : index
    %0 = vector.load %arg1[%c0, %c0_0] : memref<128x1xi32, #tpu.memory_space<vmem>>, vector<128x1xi32>
    %c0_1 = arith.constant 0 : index
    %c0_2 = arith.constant 0 : index
    %1 = vector.load %arg2[%c0_1, %c0_2] : memref<1x5xi32, #tpu.memory_space<vmem>>, vector<1x5xi32>
    %2 = vector.broadcast %0 : vector<128x1xi32> to vector<128x5xi32>
    %3 = vector.broadcast %1 : vector<1x5xi32> to vector<128x5xi32>
    %4 = arith.cmpi eq, %2, %3 : vector<128x5xi32>
    %5 = arith.extui %4 : vector<128x5xi1> to vector<128x5xi32>
    %c0_3 = arith.constant 0 : index
    %c0_4 = arith.constant 0 : index
    %6 = vector.load %arg3[%c0_3, %c0_4] : memref<128x5xi32, #tpu.memory_space<vmem>>, vector<128x5xi32>
    tpu.vector_store %arg3[%c0_3, %c0_4], %5 {strides = array<i32>} : memref<128x5xi32, #tpu.memory_space<vmem>>, vector<128x5xi32>,
    return
  }
  func.func @transform_0(%arg0: i32) -> (i32, i32) {
    %c0_i32 = arith.constant 0 : i32
    %c0_i32_0 = arith.constant 0 : i32
    return %arg0, %c0_i32 : i32, i32
  }
  func.func @transform_1(%arg0: i32) -> (i32, i32) {
    %c0_i32 = arith.constant 0 : i32
    %c0_i32_0 = arith.constant 0 : i32
    %c0_i32_1 = arith.constant 0 : i32
    return %c0_i32, %c0_i32_0 : i32, i32
  }
  func.func @transform_2(%arg0: i32) -> (i32, i32) {
    %c0_i32 = arith.constant 0 : i32
    %c0_i32_0 = arith.constant 0 : i32
    return %arg0, %c0_i32 : i32, i32
  }
}

</mosaic_0001>

<llo_original>
// kernel: tpu_custom_call.1
$region0: #{tpu_custom_call.1}
  #allocation0 [shape = 'u32[]', space=smem, size = 0x4, offset = 0x4, fixed_abs, tag = 'smem constant byte address 0x4 - core index']
  #allocation1 [shape = 'u32[144,128]{1,0:T(1,128)}', space=vmem, size = 0x12000, scoped, tag = 'internal scratch']
  %s0 = inlined_call_operand.vmem [shape: s32[300,1], index: 0, kind: input, shape index: {}]
  %s1 = inlined_call_operand.vmem [shape: s32[1,5], index: 1, kind: input, shape index: {}]
  %s2 = inlined_call_operand.vmem [shape: s32[300,5], index: 2, kind: output, shape index: {}]
  %s3 = sld [smem:[#allocation0]]
  $region89: #{tpu_custom_call.1} parent=0
    _
  %s5 = ssub.s32 1, %s3
  %s6 = scalar_select 0, %s5, %s3
  $region1: #{tpu_custom_call.1} parent=0
    #allocation2 [shape = 'u8[131072]{0}', space=vmem, size = 0x20000, scoped, tag = 'output window, operand 0']
    loop: start=0, step=1, limit=5
    $region2: #{tpu_custom_call.1} parent=1 // loop_pre_header
      _
    $region3: #{tpu_custom_call.1} parent=1 // loop_header
      %s8 = sphi 0, %s12
      %p9 = scmp.ge.s32.totalorder %s8, 5
      %s18 = sphi 0, %s20
      %s21 = sphi 0, %s18
      %s22 = sphi 0, %s21
      %s38 = sphi 0, %s22
      %s42 = sphi 0, %s42
      %s44 = sphi 0, %s42
      %s45 = sphi 0, %s44
      %s59 = sphi 0, %s45
      %s65 = sphi 0, %s67
      %s68 = sphi 0, %s65
      %s69 = sphi 0, %s68
      %s85 = sphi 0, %s69
    $region4: #{tpu_custom_call.1} parent=1 // loop_header_branch
      %11 = sbr.rel (%p9) target = $region8
    $region5: #{tpu_custom_call.1} parent=1 // loop_body
      %s13 = ssub.s32 %s8, 1
      %s14 = ssub.s32 %s8, 2
      %s15 = sadd.s32 %s8, 1
      %s16 = ssub.s32 %s8, %s15
      %p17 = scmp.eq.s32.totalorder %s16, 0
      %s19 = sadd.s32 %s18, 1
      %s20 = scalar_select %p17, %s18, %s19
      %p23 = pneg %p17
      %p24 = scmp.eq.s32.totalorder %s8, 2
      %p25 = por %p23, %p24
      %p26 = scmp.ne.s32.totalorder %s18, %s21
      %p27 = scmp.eq.s32.totalorder %s8, 0
      %p28 = por %p26, %p27
      %p29 = scmp.ne.s32.totalorder %s18, %s21
      %p30 = scmp.eq.s32.totalorder %s13, 2
      %p31 = por %p29, %p30
      %p32 = scmp.ne.s32.totalorder %s21, %s22
      %p33 = scmp.eq.s32.totalorder %s13, 0
      %p34 = por %p32, %p33
      %p35 = scmp.ne.s32.totalorder %s21, %s22
      %p36 = scmp.eq.s32.totalorder %s14, 2
      %p37 = por %p35, %p36
      %p39 = scmp.ne.s32.totalorder %s22, %s38
      %p40 = scmp.eq.s32.totalorder %s14, 0
      %p41 = por %p39, %p40
      %s43 = sadd.s32 %s42, 1
      %p46 = scmp.eq.s32.totalorder %s8, 2
      %p47 = scmp.ne.s32.totalorder %s42, %s44
      %p48 = scmp.eq.s32.totalorder %s8, 0
      %p49 = por %p47, %p48
      %p50 = scmp.ne.s32.totalorder %s42, %s44
      %p51 = scmp.eq.s32.totalorder %s13, 2
      %p52 = por %p50, %p51
      %p53 = scmp.ne.s32.totalorder %s44, %s45
      %p54 = scmp.eq.s32.totalorder %s13, 0
      %p55 = por %p53, %p54
      %p56 = scmp.ne.s32.totalorder %s44, %s45
      %p57 = scmp.eq.s32.totalorder %s14, 2
      %p58 = por %p56, %p57
      %p60 = scmp.ne.s32.totalorder %s45, %s59
      %p61 = scmp.eq.s32.totalorder %s14, 0
      %p62 = por %p60, %p61
      %s63 = ssub.s32 %s8, %s15
      %p64 = scmp.eq.s32.totalorder %s63, 0
      %s66 = sadd.s32 %s65, 1
      %s67 = scalar_select %p64, %s65, %s66
      %p70 = pneg %p64
      %p71 = scmp.eq.s32.totalorder %s8, 2
      %p72 = por %p70, %p71
      %p73 = scmp.ne.s32.totalorder %s65, %s68
      %p74 = scmp.eq.s32.totalorder %s8, 0
      %p75 = por %p73, %p74
      %p76 = scmp.ne.s32.totalorder %s65, %s68
      %p77 = scmp.eq.s32.totalorder %s13, 2
      %p78 = por %p76, %p77
      %p79 = scmp.ne.s32.totalorder %s68, %s69
      %p80 = scmp.eq.s32.totalorder %s13, 0
      %p81 = por %p79, %p80
      %p82 = scmp.ne.s32.totalorder %s68, %s69
      %p83 = scmp.eq.s32.totalorder %s14, 2
      %p84 = por %p82, %p83
      %p86 = scmp.ne.s32.totalorder %s69, %s85
      %p87 = scmp.eq.s32.totalorder %s14, 0
      %p88 = por %p86, %p87
      %p89 = scmp.le.s32.totalorder 1, %s8
      %p90 = scmp.lt.s32.totalorder %s8, 4
      %p91 = pnand %p89, %p90
      %p92 = pneg %p91
      // Predicated region
      $region9: #{tpu_custom_call.1} parent=5 // pred_check
        _
      $region10: #{tpu_custom_call.1} parent=5 // pred_check_branch
        %94 = sbr.rel (%p91) target = $region12
      $region11: #{tpu_custom_call.1} parent=5 // pred_region
        %s95 = ssub.s32 %s8, 1
        // Predicated region
        $region13: #{tpu_custom_call.1} parent=11 // pred_check
          %p96 = pneg %p55
        $region14: #{tpu_custom_call.1} parent=11 // pred_check_branch
          %98 = sbr.rel (%p96) target = $region16
        $region15: #{tpu_custom_call.1} parent=11 // pred_region
          _
        $region16: #{tpu_custom_call.1} parent=11 // pred_fallthru
          _
      $region12: #{tpu_custom_call.1} parent=5 // pred_fallthru
        _
      %p99 = scmp.lt.s32.totalorder %s8, 3
      // Predicated region
      $region17: #{tpu_custom_call.1} parent=5 // pred_check
        %p100 = pneg %p99
      $region18: #{tpu_custom_call.1} parent=5 // pred_check_branch
        %102 = sbr.rel (%p100) target = $region20
      $region19: #{tpu_custom_call.1} parent=5 // pred_region
        // Predicated region
        $region21: #{tpu_custom_call.1} parent=19 // pred_check
          %p103 = pneg %p28
        $region22: #{tpu_custom_call.1} parent=19 // pred_check_branch
          %105 = sbr.rel (%p103) target = $region24
        $region23: #{tpu_custom_call.1} parent=19 // pred_region
          %s106 = smul.u32 16, %s8
          %s107 = ssub.s32 38, %s106
          %p108 = scmp.lt.s32.totalorder %s107, 16
          %s109 = scalar_select %p108, %s107, 16
          %s110 = smul.u32 128, %s109
          %p111 = scmp.lt.s32.totalorder %s106, 37
          %s112 = scalar_select %p111, %s106, 37
          %s113 = smul.addr %s112, 8
          %s114 = scalar_lea.vmem %s0, %s113
          %s115 = smul.u32 16, %s8
          %s116 = ssub.s32 38, %s115
          %p117 = scmp.lt.s32.totalorder %s116, 16
          %s118 = scalar_select %p117, %s116, 16
          %s119 = smul.u32 128, %s118
        $region24: #{tpu_custom_call.1} parent=19 // pred_fallthru
          _
      $region20: #{tpu_custom_call.1} parent=5 // pred_fallthru
        _
      %p120 = scmp.le.s32.totalorder 1, %s8
      %p121 = scmp.lt.s32.totalorder %s8, 4
      %p122 = pnand %p120, %p121
      %p123 = pneg %p122
      // Predicated region
      $region25: #{tpu_custom_call.1} parent=5 // pred_check
        _
      $region26: #{tpu_custom_call.1} parent=5 // pred_check_branch
        %125 = sbr.rel (%p122) target = $region28
      $region27: #{tpu_custom_call.1} parent=5 // pred_region
        %s126 = ssub.s32 %s8, 1
        %s127 = smul.u32 16, %s13
        %s128 = ssub.s32 38, %s127
        %p129 = scmp.lt.s32.totalorder %s128, 16
        %s130 = scalar_select %p129, %s128, 16
        %s131 = smul.u32 128, %s130
        %p132 = scmp.lt.s32.totalorder %s127, 37
        %s133 = scalar_select %p132, %s127, 37
        %s134 = smul.addr %s133, 8
        %s135 = scalar_lea.vmem %s0, %s134
        %p136 = pneg %p34
        %p137 = pneg %p31
        %p138 = pneg %p55
        %p139 = pneg %p52
        %p140 = pneg %p81
        %p141 = pneg %p78
        %s142 = sand.u32 %s68, 1
        %s143 = sand.u32 %s68, 1
        %s144 = smul.addr %s143, 128
        %s145 = scalar_lea.vmem [#allocation2], %s144
        %s146 = smul.u32 16, %s13
        %s147 = ssub.s32 38, %s146
        %p148 = scmp.lt.s32.totalorder %s147, 16
        %s149 = scalar_select %p148, %s147, 16
        %s150 = smul.u32 128, %s149
        %p151 = scmp.lt.s32.totalorder %s146, 37
        %s152 = scalar_select %p151, %s146, 37
        %s153 = smul.addr %s152, 8
        %s154 = scalar_lea.vmem %s0, %s153
        %s155 = smul.u32 16, %s13
        %s156 = ssub.s32 38, %s155
        %p157 = scmp.lt.s32.totalorder %s156, 16
        %s158 = scalar_select %p157, %s156, 16
        %s159 = smul.u32 128, %s158
        %s160 = smul.u32 16, %s13
        %s161 = ssub.s32 38, %s160
        %p162 = scmp.lt.s32.totalorder %s161, 16
        %s163 = scalar_select %p162, %s161, 16
        %s164 = smul.u32 128, %s163
        %v165 = vld [vmem:[%s154] sm:$0xff]
        %v166 = vld [vmem:[%s154 + $0x8] sm:$0xff]
        %v167 = vld [vmem:[%s154 + $0x10] sm:$0xff]
        %v168 = vld [vmem:[%s154 + $0x18] sm:$0xff]
        %v169 = vld [vmem:[%s154 + $0x20] sm:$0xff]
        %v170 = vld [vmem:[%s154 + $0x28] sm:$0xff]
        %v171 = vld [vmem:[%s154 + $0x30] sm:$0xff]
        %v172 = vld [vmem:[%s154 + $0x38] sm:$0xff]
        %v173 = vld [vmem:[%s154 + $0x40] sm:$0xff]
        %v174 = vld [vmem:[%s154 + $0x48] sm:$0xff]
        %v175 = vld [vmem:[%s154 + $0x50] sm:$0xff]
        %v176 = vld [vmem:[%s154 + $0x58] sm:$0xff]
        %v177 = vld [vmem:[%s154 + $0x60] sm:$0xff]
        %v178 = vld [vmem:[%s154 + $0x68] sm:$0xff]
        %v179 = vld [vmem:[%s154 + $0x70] sm:$0xff]
        %v180 = vld [vmem:[%s154 + $0x78] sm:$0xff]
        %v181 = vld [vmem:[%s1] sm:$0x1]
        %182 = vset.pattern.permute.xlu0 0
        %183 = vperm.xlu0 %182, %v165
        %v184 = vpop.permute.xlu0 %183
        %185 = vset.pattern.permute.xlu0 0
        %186 = vperm.xlu0 %185, %v166
        %v187 = vpop.permute.xlu0 %186
        %188 = vset.pattern.permute.xlu0 0
        %189 = vperm.xlu0 %188, %v167
        %v190 = vpop.permute.xlu0 %189
        %191 = vset.pattern.permute.xlu0 0
        %192 = vperm.xlu0 %191, %v168
        %v193 = vpop.permute.xlu0 %192
        %194 = vset.pattern.permute.xlu0 0
        %195 = vperm.xlu0 %194, %v169
        %v196 = vpop.permute.xlu0 %195
        %197 = vset.pattern.permute.xlu0 0
        %198 = vperm.xlu0 %197, %v170
        %v199 = vpop.permute.xlu0 %198
        %200 = vset.pattern.permute.xlu0 0
        %201 = vperm.xlu0 %200, %v171
        %v202 = vpop.permute.xlu0 %201
        %203 = vset.pattern.permute.xlu0 0
        %204 = vperm.xlu0 %203, %v172
        %v205 = vpop.permute.xlu0 %204
        %206 = vset.pattern.permute.xlu0 0
        %207 = vperm.xlu0 %206, %v173
        %v208 = vpop.permute.xlu0 %207
        %209 = vset.pattern.permute.xlu0 0
        %210 = vperm.xlu0 %209, %v174
        %v211 = vpop.permute.xlu0 %210
        %212 = vset.pattern.permute.xlu0 0
        %213 = vperm.xlu0 %212, %v175
        %v214 = vpop.permute.xlu0 %213
        %215 = vset.pattern.permute.xlu0 0
        %216 = vperm.xlu0 %215, %v176
        %v217 = vpop.permute.xlu0 %216
        %218 = vset.pattern.permute.xlu0 0
        %219 = vperm.xlu0 %218, %v177
        %v220 = vpop.permute.xlu0 %219
        %221 = vset.pattern.permute.xlu0 0
        %222 = vperm.xlu0 %221, %v178
        %v223 = vpop.permute.xlu0 %222
        %224 = vset.pattern.permute.xlu0 0
        %225 = vperm.xlu0 %224, %v179
        %v226 = vpop.permute.xlu0 %225
        %227 = vset.pattern.permute.xlu0 0
        %228 = vperm.xlu0 %227, %v180
        %v229 = vpop.permute.xlu0 %228
        %v230 = vlaneseq
        %v231 = vshrl.u32 %v230, 7
        %v232 = vsub.s32 0, %v231
        %v233 = vrot.slane %v181, %v232
        %vm234 = vcmp.eq.s32.totalorder %v184, %v233
        %vm235 = vcmp.eq.s32.totalorder %v187, %v233
        %vm236 = vcmp.eq.s32.totalorder %v190, %v233
        %vm237 = vcmp.eq.s32.totalorder %v193, %v233
        %vm238 = vcmp.eq.s32.totalorder %v196, %v233
        %vm239 = vcmp.eq.s32.totalorder %v199, %v233
        %vm240 = vcmp.eq.s32.totalorder %v202, %v233
        %vm241 = vcmp.eq.s32.totalorder %v205, %v233
        %vm242 = vcmp.eq.s32.totalorder %v208, %v233
        %vm243 = vcmp.eq.s32.totalorder %v211, %v233
        %vm244 = vcmp.eq.s32.totalorder %v214, %v233
        %vm245 = vcmp.eq.s32.totalorder %v217, %v233
        %vm246 = vcmp.eq.s32.totalorder %v220, %v233
        %vm247 = vcmp.eq.s32.totalorder %v223, %v233
        %vm248 = vcmp.eq.s32.totalorder %v226, %v233
        %vm249 = vcmp.eq.s32.totalorder %v229, %v233
        %v250 = vsel %vm234, 1, 0
        %v251 = vsel %vm235, 1, 0
        %v252 = vsel %vm236, 1, 0
        %v253 = vsel %vm237, 1, 0
        %v254 = vsel %vm238, 1, 0
        %v255 = vsel %vm239, 1, 0
        %v256 = vsel %vm240, 1, 0
        %v257 = vsel %vm241, 1, 0
        %v258 = vsel %vm242, 1, 0
        %v259 = vsel %vm243, 1, 0
        %v260 = vsel %vm244, 1, 0
        %v261 = vsel %vm245, 1, 0
        %v262 = vsel %vm246, 1, 0
        %v263 = vsel %vm247, 1, 0
        %v264 = vsel %vm248, 1, 0
        %v265 = vsel %vm249, 1, 0
        %vm266 = vcmask 39936
        %267 = vst.msk [vmem:[%s145] sm:$0xff] %vm266, %v250
        %268 = vst.msk [vmem:[%s145 + $0x8] sm:$0xff] %vm266, %v251
        %269 = vst.msk [vmem:[%s145 + $0x10] sm:$0xff] %vm266, %v252
        %270 = vst.msk [vmem:[%s145 + $0x18] sm:$0xff] %vm266, %v253
        %271 = vst.msk [vmem:[%s145 + $0x20] sm:$0xff] %vm266, %v254
        %272 = vst.msk [vmem:[%s145 + $0x28] sm:$0xff] %vm266, %v255
        %273 = vst.msk [vmem:[%s145 + $0x30] sm:$0xff] %vm266, %v256
        %274 = vst.msk [vmem:[%s145 + $0x38] sm:$0xff] %vm266, %v257
        %275 = vst.msk [vmem:[%s145 + $0x40] sm:$0xff] %vm266, %v258
        %276 = vst.msk [vmem:[%s145 + $0x48] sm:$0xff] %vm266, %v259
        %277 = vst.msk [vmem:[%s145 + $0x50] sm:$0xff] %vm266, %v260
        %278 = vst.msk [vmem:[%s145 + $0x58] sm:$0xff] %vm266, %v261
        %279 = vst.msk [vmem:[%s145 + $0x60] sm:$0xff] %vm266, %v262
        %280 = vst.msk [vmem:[%s145 + $0x68] sm:$0xff] %vm266, %v263
        %281 = vst.msk [vmem:[%s145 + $0x70] sm:$0xff] %vm266, %v264
        %282 = vst.msk [vmem:[%s145 + $0x78] sm:$0xff] %vm266, %v265
        %s283 = sand.u32 %s68, 1
        %s284 = sand.u32 %s68, 1
        %s285 = smul.addr %s284, 128
        %s286 = scalar_lea.vmem [#allocation2], %s285
        // Predicated region
        $region29: #{tpu_custom_call.1} parent=27 // pred_check
          %p287 = pneg %p78
        $region30: #{tpu_custom_call.1} parent=27 // pred_check_branch
          %289 = sbr.rel (%p287) target = $region32
        $region31: #{tpu_custom_call.1} parent=27 // pred_region
          %s290 = smul.u32 16, %s13
          %s291 = ssub.s32 38, %s290
          %p292 = scmp.lt.s32.totalorder %s291, 16
          %s293 = scalar_select %p292, %s291, 16
          %s294 = smul.u32 128, %s293
          %p295 = scmp.ne.s32.totalorder 0, %s294
          %s296 = smul.addr %s290, 8
          %s297 = scalar_lea.vmem %s2, %s296
          // Predicated region
          $region33: #{tpu_custom_call.1} parent=31 // pred_check
            %p298 = pneg %p295
          $region34: #{tpu_custom_call.1} parent=31 // pred_check_branch
            %300 = sbr.rel (%p298) target = $region36
          $region35: #{tpu_custom_call.1} parent=31 // pred_region
            // Predicated region
            $region37: #{tpu_custom_call.1} parent=35 // pred_check
              _
            $region38: #{tpu_custom_call.1} parent=35 // pred_check_branch
              %302 = sbr.rel (0) target = $region40
            $region39: #{tpu_custom_call.1} parent=35 // pred_region
              // Predicated region
              $region59: #{tpu_custom_call.1} parent=39 // pred_check
                _
              $region60: #{tpu_custom_call.1} parent=39 // pred_check_branch
                %381 = sbr.rel (0) target = $region62
              $region61: #{tpu_custom_call.1} parent=39 // pred_region
                %s382 = sshrl.u32 %s293, 4
                // While loop
                $region63: #{tpu_custom_call.1} parent=61 // loop_pre_header
                  _
                $region64: #{tpu_custom_call.1} parent=61 // loop_header
                  %s384 = sphi 0, %s386
                  %p385 = scmp.ge.s32.totalorder %s384, %s382
                  %s389 = sphi 0, %s426
                  %s390 = sphi %s286, %s429
                  %s391 = sphi %s297, %s430
                $region65: #{tpu_custom_call.1} parent=61 // loop_header_branch
                  %388 = sbr.rel (%p385) target = $region69
                $region66: #{tpu_custom_call.1} parent=61 // loop_body
                  %v392 = vld [vmem:[%s390] sm:$0xff]
                  %393 = vst [vmem:[%s391] sm:$0xff] %v392
                  %v394 = vld [vmem:[%s390 + $0x8] sm:$0xff]
                  %395 = vst [vmem:[%s391 + $0x8] sm:$0xff] %v394
                  %v396 = vld [vmem:[%s390 + $0x10] sm:$0xff]
                  %397 = vst [vmem:[%s391 + $0x10] sm:$0xff] %v396
                  %v398 = vld [vmem:[%s390 + $0x18] sm:$0xff]
                  %399 = vst [vmem:[%s391 + $0x18] sm:$0xff] %v398
                  %v400 = vld [vmem:[%s390 + $0x20] sm:$0xff]
                  %401 = vst [vmem:[%s391 + $0x20] sm:$0xff] %v400
                  %v402 = vld [vmem:[%s390 + $0x28] sm:$0xff]
                  %403 = vst [vmem:[%s391 + $0x28] sm:$0xff] %v402
                  %v404 = vld [vmem:[%s390 + $0x30] sm:$0xff]
                  %405 = vst [vmem:[%s391 + $0x30] sm:$0xff] %v404
                  %v406 = vld [vmem:[%s390 + $0x38] sm:$0xff]
                  %407 = vst [vmem:[%s391 + $0x38] sm:$0xff] %v406
                  %v408 = vld [vmem:[%s390 + $0x40] sm:$0xff]
                  %409 = vst [vmem:[%s391 + $0x40] sm:$0xff] %v408
                  %v410 = vld [vmem:[%s390 + $0x48] sm:$0xff]
                  %411 = vst [vmem:[%s391 + $0x48] sm:$0xff] %v410
                  %v412 = vld [vmem:[%s390 + $0x50] sm:$0xff]
                  %413 = vst [vmem:[%s391 + $0x50] sm:$0xff] %v412
                  %v414 = vld [vmem:[%s390 + $0x58] sm:$0xff]
                  %415 = vst [vmem:[%s391 + $0x58] sm:$0xff] %v414
                  %v416 = vld [vmem:[%s390 + $0x60] sm:$0xff]
                  %417 = vst [vmem:[%s391 + $0x60] sm:$0xff] %v416
                  %v418 = vld [vmem:[%s390 + $0x68] sm:$0xff]
                  %419 = vst [vmem:[%s391 + $0x68] sm:$0xff] %v418
                  %v420 = vld [vmem:[%s390 + $0x70] sm:$0xff]
                  %421 = vst [vmem:[%s391 + $0x70] sm:$0xff] %v420
                  %v422 = vld [vmem:[%s390 + $0x78] sm:$0xff]
                  %423 = vst [vmem:[%s391 + $0x78] sm:$0xff] %v422
                  %s424 = sadd.s32 1, %s389
                  %p425 = scmp.ge.s32.totalorder %s424, %s382
                  %s426 = scalar_select %p425, 0, %s424
                  %s427 = smul.u32 %s426, 128
                  %s428 = smul.u32 %s426, 128
                  %s429 = scalar_lea.vmem %s286, %s427 [#allocation2]
                  %s430 = scalar_lea.vmem %s297, %s428
                $region67: #{tpu_custom_call.1} parent=61 // loop_footer
                  %s386 = sadd.s32 %s384, 1
                $region68: #{tpu_custom_call.1} parent=61 // loop_footer_branch
                  %383 = sbr.rel target = $region64
                $region69: #{tpu_custom_call.1} parent=61 // loop_exit
                  _
                %s431 = sshrl.u32 %s293, 4
                %s432 = sand.u32 %s293, 15
                %s433 = smul.u32 %s431, 16
                %s434 = smul.u32 8, %s433
                %s435 = scalar_lea.vmem %s286, %s434 [#allocation2]
                %s436 = smul.u32 8, %s433
                %s437 = scalar_lea.vmem %s297, %s436
                // While loop
                $region70: #{tpu_custom_call.1} parent=61 // loop_pre_header
                  _
                $region71: #{tpu_custom_call.1} parent=61 // loop_header
                  %s439 = sphi 0, %s441
                  %p440 = scmp.ge.s32.totalorder %s439, %s432
                  %s444 = sphi 0, %s451
                  %s445 = sphi %s435, %s454
                  %s446 = sphi %s437, %s455
                $region72: #{tpu_custom_call.1} parent=61 // loop_header_branch
                  %443 = sbr.rel (%p440) target = $region76
                $region73: #{tpu_custom_call.1} parent=61 // loop_body
                  %v447 = vld [vmem:[%s445] sm:$0xff]
                  %448 = vst [vmem:[%s446] sm:$0xff] %v447
                  %s449 = sadd.s32 1, %s444
                  %p450 = scmp.ge.s32.totalorder %s449, %s432
                  %s451 = scalar_select %p450, 0, %s449
                  %s452 = smul.u32 %s451, 8
                  %s453 = smul.u32 %s451, 8
                  %s454 = scalar_lea.vmem %s435, %s452 [#allocation2]
                  %s455 = scalar_lea.vmem %s437, %s453
                $region74: #{tpu_custom_call.1} parent=61 // loop_footer
                  %s441 = sadd.s32 %s439, 1
                $region75: #{tpu_custom_call.1} parent=61 // loop_footer_branch
                  %438 = sbr.rel target = $region71
                $region76: #{tpu_custom_call.1} parent=61 // loop_exit
                  _
              $region62: #{tpu_custom_call.1} parent=39 // pred_fallthru
                _
              // Predicated region
              $region77: #{tpu_custom_call.1} parent=39 // pred_check
                _
              $region78: #{tpu_custom_call.1} parent=39 // pred_check_branch
                %457 = sbr.rel target = $region80
              $region79: #{tpu_custom_call.1} parent=39 // pred_region
                _
              $region80: #{tpu_custom_call.1} parent=39 // pred_fallthru
                _
            $region40: #{tpu_custom_call.1} parent=35 // pred_fallthru
              _
            // Predicated region
            $region41: #{tpu_custom_call.1} parent=35 // pred_check
              _
            $region42: #{tpu_custom_call.1} parent=35 // pred_check_branch
              %304 = sbr.rel target = $region44
            $region43: #{tpu_custom_call.1} parent=35 // pred_region
              %s306 = sshrl.u32 %s293, 4
              // While loop
              $region45: #{tpu_custom_call.1} parent=43 // loop_pre_header
                _
              $region46: #{tpu_custom_call.1} parent=43 // loop_header
                %s308 = sphi 0, %s310
                %p309 = scmp.ge.s32.totalorder %s308, %s306
                %s313 = sphi 0, %s350
                %s314 = sphi %s286, %s353
                %s315 = sphi %s297, %s354
              $region47: #{tpu_custom_call.1} parent=43 // loop_header_branch
                %312 = sbr.rel (%p309) target = $region51
              $region48: #{tpu_custom_call.1} parent=43 // loop_body
                %v316 = vld [vmem:[%s314] sm:$0xff]
                %317 = vst [vmem:[%s315] sm:$0xff] %v316
                %v318 = vld [vmem:[%s314 + $0x8] sm:$0xff]
                %319 = vst [vmem:[%s315 + $0x8] sm:$0xff] %v318
                %v320 = vld [vmem:[%s314 + $0x10] sm:$0xff]
                %321 = vst [vmem:[%s315 + $0x10] sm:$0xff] %v320
                %v322 = vld [vmem:[%s314 + $0x18] sm:$0xff]
                %323 = vst [vmem:[%s315 + $0x18] sm:$0xff] %v322
                %v324 = vld [vmem:[%s314 + $0x20] sm:$0xff]
                %325 = vst [vmem:[%s315 + $0x20] sm:$0xff] %v324
                %v326 = vld [vmem:[%s314 + $0x28] sm:$0xff]
                %327 = vst [vmem:[%s315 + $0x28] sm:$0xff] %v326
                %v328 = vld [vmem:[%s314 + $0x30] sm:$0xff]
                %329 = vst [vmem:[%s315 + $0x30] sm:$0xff] %v328
                %v330 = vld [vmem:[%s314 + $0x38] sm:$0xff]
                %331 = vst [vmem:[%s315 + $0x38] sm:$0xff] %v330
                %v332 = vld [vmem:[%s314 + $0x40] sm:$0xff]
                %333 = vst [vmem:[%s315 + $0x40] sm:$0xff] %v332
                %v334 = vld [vmem:[%s314 + $0x48] sm:$0xff]
                %335 = vst [vmem:[%s315 + $0x48] sm:$0xff] %v334
                %v336 = vld [vmem:[%s314 + $0x50] sm:$0xff]
                %337 = vst [vmem:[%s315 + $0x50] sm:$0xff] %v336
                %v338 = vld [vmem:[%s314 + $0x58] sm:$0xff]
                %339 = vst [vmem:[%s315 + $0x58] sm:$0xff] %v338
                %v340 = vld [vmem:[%s314 + $0x60] sm:$0xff]
                %341 = vst [vmem:[%s315 + $0x60] sm:$0xff] %v340
                %v342 = vld [vmem:[%s314 + $0x68] sm:$0xff]
                %343 = vst [vmem:[%s315 + $0x68] sm:$0xff] %v342
                %v344 = vld [vmem:[%s314 + $0x70] sm:$0xff]
                %345 = vst [vmem:[%s315 + $0x70] sm:$0xff] %v344
                %v346 = vld [vmem:[%s314 + $0x78] sm:$0xff]
                %347 = vst [vmem:[%s315 + $0x78] sm:$0xff] %v346
                %s348 = sadd.s32 1, %s313
                %p349 = scmp.ge.s32.totalorder %s348, %s306
                %s350 = scalar_select %p349, 0, %s348
                %s351 = smul.u32 %s350, 128
                %s352 = smul.u32 %s350, 128
                %s353 = scalar_lea.vmem %s286, %s351 [#allocation2]
                %s354 = scalar_lea.vmem %s297, %s352
              $region49: #{tpu_custom_call.1} parent=43 // loop_footer
                %s310 = sadd.s32 %s308, 1
              $region50: #{tpu_custom_call.1} parent=43 // loop_footer_branch
                %307 = sbr.rel target = $region46
              $region51: #{tpu_custom_call.1} parent=43 // loop_exit
                _
              %s355 = sshrl.u32 %s293, 4
              %s356 = sand.u32 %s293, 15
              %s357 = smul.u32 %s355, 16
              %s358 = smul.u32 8, %s357
              %s359 = scalar_lea.vmem %s286, %s358 [#allocation2]
              %s360 = smul.u32 8, %s357
              %s361 = scalar_lea.vmem %s297, %s360
              // While loop
              $region52: #{tpu_custom_call.1} parent=43 // loop_pre_header
                _
              $region53: #{tpu_custom_call.1} parent=43 // loop_header
                %s363 = sphi 0, %s365
                %p364 = scmp.ge.s32.totalorder %s363, %s356
                %s368 = sphi 0, %s375
                %s369 = sphi %s359, %s378
                %s370 = sphi %s361, %s379
              $region54: #{tpu_custom_call.1} parent=43 // loop_header_branch
                %367 = sbr.rel (%p364) target = $region58
              $region55: #{tpu_custom_call.1} parent=43 // loop_body
                %v371 = vld [vmem:[%s369] sm:$0xff]
                %372 = vst [vmem:[%s370] sm:$0xff] %v371
                %s373 = sadd.s32 1, %s368
                %p374 = scmp.ge.s32.totalorder %s373, %s356
                %s375 = scalar_select %p374, 0, %s373
                %s376 = smul.u32 %s375, 8
                %s377 = smul.u32 %s375, 8
                %s378 = scalar_lea.vmem %s359, %s376 [#allocation2]
                %s379 = scalar_lea.vmem %s361, %s377
              $region56: #{tpu_custom_call.1} parent=43 // loop_footer
                %s365 = sadd.s32 %s363, 1
              $region57: #{tpu_custom_call.1} parent=43 // loop_footer_branch
                %362 = sbr.rel target = $region53
              $region58: #{tpu_custom_call.1} parent=43 // loop_exit
                _
            $region44: #{tpu_custom_call.1} parent=35 // pred_fallthru
              _
          $region36: #{tpu_custom_call.1} parent=31 // pred_fallthru
            _
          %458 = vnop
        $region32: #{tpu_custom_call.1} parent=27 // pred_fallthru
          _
      $region28: #{tpu_custom_call.1} parent=5 // pred_fallthru
        _
      %p459 = scmp.le.s32.totalorder 2, %s8
      // Predicated region
      $region81: #{tpu_custom_call.1} parent=5 // pred_check
        %p460 = pneg %p459
      $region82: #{tpu_custom_call.1} parent=5 // pred_check_branch
        %462 = sbr.rel (%p460) target = $region84
      $region83: #{tpu_custom_call.1} parent=5 // pred_region
        %s463 = ssub.s32 %s8, 2
        // Predicated region
        $region85: #{tpu_custom_call.1} parent=83 // pred_check
          %p464 = pneg %p84
        $region86: #{tpu_custom_call.1} parent=83 // pred_check_branch
          %466 = sbr.rel (%p464) target = $region88
        $region87: #{tpu_custom_call.1} parent=83 // pred_region
          %s467 = sand.u32 %s69, 1
          %s468 = sand.u32 %s69, 1
          %s469 = smul.addr %s468, 128
          %s470 = scalar_lea.vmem [#allocation2], %s469
        $region88: #{tpu_custom_call.1} parent=83 // pred_fallthru
          _
      $region84: #{tpu_custom_call.1} parent=5 // pred_fallthru
        _
    $region6: #{tpu_custom_call.1} parent=1 // loop_footer
      %s12 = sadd.s32 1, %s8
    $region7: #{tpu_custom_call.1} parent=1 // loop_footer_branch
      %7 = sbr.rel target = $region3
    $region8: #{tpu_custom_call.1} parent=1 // loop_exit
      _

</llo_original>
